<compile_context>
chip_gen: v7x
topology: tpu7x:2x2x1
jax: 0.10.0
libtpu: 0.0.40
codegen_flags: <defaults>
</compile_context>

<pallas_src>
import functools

import jax
import jax.numpy as jnp
from jax.experimental import pallas as pl
from jax.experimental.pallas import tpu as pltpu


def _make_hloss_kernel(n_rows: int, n_classes: int, tile_n: int, c_pad: int):
    inv_n = 1.0 / float(n_rows)
    inv_c = 1.0 / float(n_classes)

    def kernel(x_ref, o_ref, acc_ref):
        i = pl.program_id(0)

        # Zero the (1, C_pad) accumulator on the first batch tile.
        @pl.when(i == 0)
        def _():
            acc_ref[...] = jnp.zeros_like(acc_ref)

        x = x_ref[...].astype(jnp.float32)                      # (tile_n, c_pad)

        # Row mask for the (possibly ragged) final batch tile.
        row_ids = jax.lax.broadcasted_iota(jnp.int32, (tile_n, 1), 0) + i * tile_n
        row_ok = row_ids < n_rows                               # (tile_n, 1)

        # Numerically stable softmax over the class axis.
        m = jnp.max(x, axis=1, keepdims=True)
        e = jnp.exp(x - m)
        s = jnp.sum(e, axis=1, keepdims=True)
        inv = pl.reciprocal(s, approx=True)                     # EUP vrcp
        inv = inv * (2.0 - s * inv)                             # 1 NR step -> ~f32 accuracy
        p = e * inv

        # Accumulate the per-class probability sum over valid rows only.
        p = jnp.where(row_ok, p, 0.0)
        acc_ref[...] += jnp.sum(p, axis=0, keepdims=True)

        # Finalize on the last batch tile.
        @pl.when(i == pl.num_programs(0) - 1)
        def _():
            pm = acc_ref[...] * inv_n                           # (1, c_pad)
            col_ids = jax.lax.broadcasted_iota(jnp.int32, (1, c_pad), 1)
            ent = jnp.where(col_ids < n_classes, pm * jnp.log(pm), 0.0)
            o_ref[0, 0] = jnp.sum(ent) * inv_c

    return kernel


def hloss(x: jax.Array, tile_n: int | None = None) -> jax.Array:
    """Pallas implementation of HLoss.forward for a 2-D input [N, C]."""
    assert x.ndim == 2, "expected [batch, classes]"
    n, c = x.shape

    # Pad the class axis to a lane-dense multiple of 128 with very negative
    # logits: exp -> 0, so per-row softmax and row sums are unchanged.
    c_pad = max(128, ((c + 127) // 128) * 128)
    if c_pad != c:
        pad = jnp.full((n, c_pad - c), -1e30, dtype=x.dtype)
        x = jnp.concatenate([x, pad], axis=1)

    # Pick the largest batch tile that keeps the double-buffered input well
    # under the VMEM budget (sized conservatively so it also fits v7x).
    if tile_n is None:
        bytes_per_row = c_pad * jnp.dtype(x.dtype).itemsize
        per_buffer_budget = 8 * 1024 * 1024                     # x2 buffers ~= 16 MiB
        tile_n = max(8, min(1024, (per_buffer_budget // bytes_per_row) // 8 * 8))
    tile_n = int(min(tile_n, ((n + 7) // 8) * 8))               # don't exceed padded batch
    tile_n = max(8, (tile_n // 8) * 8)                          # keep sublane-aligned

    grid = (pl.cdiv(n, tile_n),)
    kernel = _make_hloss_kernel(n, c, tile_n, c_pad)

    out = pl.pallas_call(
        kernel,
        out_shape=jax.ShapeDtypeStruct((1, 1), jnp.float32),
        grid_spec=pltpu.PrefetchScalarGridSpec(
            num_scalar_prefetch=0,
            grid=grid,
            in_specs=[pl.BlockSpec((tile_n, c_pad), lambda i: (i, 0))],
            out_specs=pl.BlockSpec(memory_space=pltpu.SMEM),
            scratch_shapes=[pltpu.VMEM((1, c_pad), jnp.float32)],
        ),
        compiler_params=pltpu.CompilerParams(
            dimension_semantics=("arbitrary",),                 # batch axis is a reduction
            vmem_limit_bytes=64 * 1024 * 1024,
        ),
    )(x)
    return out[0, 0]


def _hloss_ref(x: jax.Array) -> jax.Array:
    # Pure-JAX reference mirroring the PyTorch module.
    p = jax.nn.softmax(x.astype(jnp.float32), axis=1)
    pm = jnp.mean(p, axis=0)
    return jnp.mean(pm * jnp.log(pm))


if __name__ == "__main__":
    key = jax.random.PRNGKey(0)
    N, C = 20, 32                       # small batch of logits; C < 128 exercises lane padding
    x = jax.random.normal(key, (N, C), dtype=jnp.float32)

    ref = _hloss_ref(x)

    # Default tiling (single tile for this small input, ragged-row mask active).
    out = hloss(x)
    jax.block_until_ready(out)
    assert jnp.allclose(out, ref, atol=1e-5, rtol=1e-5), (out, ref)

    # Forced small tile: exercises the multi-step grid + accumulator path.
    out_tiled = hloss(x, tile_n=8)
    jax.block_until_ready(out_tiled)
    assert jnp.allclose(out_tiled, ref, atol=1e-5, rtol=1e-5), (out_tiled, ref)

    print("KERNEL_OK")
</pallas_src>

<mosaic_0001>
module attributes {stable_mosaic.version = 11 : i64} {
  func.func @kernel(%arg0: i32, %arg1: memref<24x128xf32, #tpu.memory_space<vmem>>, %arg2: memref<1x1xf32, #tpu.memory_space<smem>>, %arg3: memref<1x128xf32, #tpu.memory_space<vmem>>) attributes {dimension_semantics = [#tpu.dimension_semantics<arbitrary>], iteration_bounds = array<i64: 1>, scalar_prefetch = 0 : i64, scratch_operands = 1 : i64, tpu.core_type = #tpu.core_type<tc>, window_params = [{transform_indices = @transform_0, window_bounds = array<i64: 24, 128>}, {transform_indices = @transform_1, window_bounds = array<i64: 1, 1>}]} {
    %c0_i32 = arith.constant 0 : i32
    %0 = arith.cmpi eq, %arg0, %c0_i32 : i32
    %1 = arith.extui %0 : i1 to i32
    %c0_i32_0 = arith.constant 0 : i32
    %2 = arith.cmpi ne, %1, %c0_i32_0 : i32
    scf.if %2 {
      %cst_12 = arith.constant 0.000000e+00 : f32
      %36 = vector.broadcast %cst_12 : f32 to vector<1x128xf32>
      %c0_13 = arith.constant 0 : index
      %c0_14 = arith.constant 0 : index
      %37 = vector.load %arg3[%c0_13, %c0_14] : memref<1x128xf32, #tpu.memory_space<vmem>>, vector<1x128xf32>
      tpu.vector_store %arg3[%c0_13, %c0_14], %36 {strides = array<i32>} : memref<1x128xf32, #tpu.memory_space<vmem>>, vector<1x128xf32>,
    } else {
    }
    %c0 = arith.constant 0 : index
    %c0_1 = arith.constant 0 : index
    %3 = vector.load %arg1[%c0, %c0_1] : memref<24x128xf32, #tpu.memory_space<vmem>>, vector<24x128xf32>
    %4 = tpu.iota {dimensions = array<i32: 0>} : vector<24x1xi32>
    %c24_i32 = arith.constant 24 : i32
    %5 = arith.muli %arg0, %c24_i32 : i32
    %6 = vector.broadcast %5 : i32 to vector<24x1xi32>
    %7 = arith.addi %4, %6 : vector<24x1xi32>
    %c20_i32 = arith.constant 20 : i32
    %8 = vector.broadcast %c20_i32 : i32 to vector<24x1xi32>
    %9 = arith.cmpi slt, %7, %8 : vector<24x1xi32>
    %cst = arith.constant dense<0xFF800000> : vector<24xf32>
    %10 = vector.multi_reduction <maximumf>, %3, %cst [1] : vector<24x128xf32> to vector<24xf32>
    %11 = vector.shape_cast %10 : vector<24xf32> to vector<24x1xf32>
    %12 = vector.broadcast %11 : vector<24x1xf32> to vector<24x128xf32>
    %13 = arith.subf %3, %12 : vector<24x128xf32>
    %14 = math.exp %13 : vector<24x128xf32>
    %cst_2 = arith.constant dense<0.000000e+00> : vector<24xf32>
    %15 = vector.multi_reduction <add>, %14, %cst_2 [1] : vector<24x128xf32> to vector<24xf32>
    %16 = vector.shape_cast %15 : vector<24xf32> to vector<24x1xf32>
    %17 = tpu.reciprocal %16 {approx = true} : vector<24x1xf32> -> vector<24x1xf32>
    %18 = arith.mulf %16, %17 : vector<24x1xf32>
    %cst_3 = arith.constant 2.000000e+00 : f32
    %19 = vector.broadcast %cst_3 : f32 to vector<24x1xf32>
    %20 = arith.subf %19, %18 : vector<24x1xf32>
    %21 = arith.mulf %17, %20 : vector<24x1xf32>
    %22 = vector.broadcast %21 : vector<24x1xf32> to vector<24x128xf32>
    %23 = arith.mulf %14, %22 : vector<24x128xf32>
    %cst_4 = arith.constant 0.000000e+00 : f32
    %24 = vector.shape_cast %9 : vector<24x1xi1> to vector<24x1xi1>
    %25 = vector.broadcast %24 : vector<24x1xi1> to vector<24x128xi1>
    %26 = vector.broadcast %cst_4 : f32 to vector<24x128xf32>
    %27 = arith.select %25, %23, %26 : vector<24x128xi1>, vector<24x128xf32>
    %c0_5 = arith.constant 0 : index
    %c0_6 = arith.constant 0 : index
    %28 = vector.load %arg3[%c0_5, %c0_6] : memref<1x128xf32, #tpu.memory_space<vmem>>, vector<1x128xf32>
    %cst_7 = arith.constant dense<0.000000e+00> : vector<128xf32>
    %29 = vector.multi_reduction <add>, %27, %cst_7 [0] : vector<24x128xf32> to vector<128xf32>
    %30 = vector.shape_cast %29 : vector<128xf32> to vector<1x128xf32>
    %31 = arith.addf %28, %30 : vector<1x128xf32>
    %c0_8 = arith.constant 0 : index
    %c0_9 = arith.constant 0 : index
    %32 = vector.load %arg3[%c0_8, %c0_9] : memref<1x128xf32, #tpu.memory_space<vmem>>, vector<1x128xf32>
    tpu.vector_store %arg3[%c0_8, %c0_9], %31 {strides = array<i32>} : memref<1x128xf32, #tpu.memory_space<vmem>>, vector<1x128xf32>,
    %c0_i32_10 = arith.constant 0 : i32
    %33 = arith.cmpi eq, %arg0, %c0_i32_10 : i32
    %34 = arith.extui %33 : i1 to i32
    %c0_i32_11 = arith.constant 0 : i32
    %35 = arith.cmpi ne, %34, %c0_i32_11 : i32
    scf.if %35 {
      %c0_12 = arith.constant 0 : index
      %c0_13 = arith.constant 0 : index
      %36 = vector.load %arg3[%c0_12, %c0_13] : memref<1x128xf32, #tpu.memory_space<vmem>>, vector<1x128xf32>
      %cst_14 = arith.constant 5.000000e-02 : f32
      %37 = vector.broadcast %cst_14 : f32 to vector<1x128xf32>
      %38 = arith.mulf %36, %37 : vector<1x128xf32>
      %39 = tpu.iota {dimensions = array<i32: 1>} : vector<1x128xi32>
      %c32_i32 = arith.constant 32 : i32
      %40 = vector.broadcast %c32_i32 : i32 to vector<1x128xi32>
      %41 = arith.cmpi slt, %39, %40 : vector<1x128xi32>
      %42 = math.log %38 : vector<1x128xf32>
      %43 = arith.mulf %38, %42 : vector<1x128xf32>
      %cst_15 = arith.constant 0.000000e+00 : f32
      %44 = vector.broadcast %cst_15 : f32 to vector<1x128xf32>
      %45 = arith.select %41, %43, %44 : vector<1x128xi1>, vector<1x128xf32>
      %46 = vector.shape_cast %45 : vector<1x128xf32> to vector<1x1x128xf32>
      %cst_16 = arith.constant dense<0.000000e+00> : vector<1xf32>
      %47 = vector.multi_reduction <add>, %46, %cst_16 [1, 2] : vector<1x1x128xf32> to vector<1xf32>
      %48 = vector.shape_cast %47 : vector<1xf32> to vector<1x1x1xf32>
      %49 = vector.extract %48[0, 0, 0] : f32 from vector<1x1x1xf32>
      %cst_17 = arith.constant 3.125000e-02 : f32
      %50 = arith.mulf %49, %cst_17 : f32
      %c0_18 = arith.constant 0 : index
      %c0_19 = arith.constant 0 : index
      %51 = memref.load %arg2[%c0_18, %c0_19] : memref<1x1xf32, #tpu.memory_space<smem>>
      memref.store %50, %arg2[%c0_18, %c0_19] : memref<1x1xf32, #tpu.memory_space<smem>>
    } else {
    }
    return
  }
  func.func @transform_0(%arg0: i32) -> (i32, i32) {
    %c0_i32 = arith.constant 0 : i32
    %c0_i32_0 = arith.constant 0 : i32
    return %arg0, %c0_i32 : i32, i32
  }
  func.func @transform_1(%arg0: i32) -> (i32, i32) {
    %c0_i32 = arith.constant 0 : i32
    %c0_i32_0 = arith.constant 0 : i32
    %c0_i32_1 = arith.constant 0 : i32
    return %c0_i32, %c0_i32_0 : i32, i32
  }
}

</mosaic_0001>

<llo_original>
// kernel: tpu_custom_call.1
$region0: #{tpu_custom_call.1}
  #allocation0 [shape = 'u32[]', space=smem, size = 0x4, offset = 0x4, fixed_abs, tag = 'smem constant byte address 0x4 - core index']
  #allocation1 [shape = 'u32[144,128]{1,0:T(1,128)}', space=vmem, size = 0x12000, scoped, tag = 'internal scratch']
  #allocation2 [shape = 'f32[1,128]{1,0:T(1,128)}', space=vmem, size = 0x200, scoped, tag = 'scratch operand']
  %s0 = inlined_call_operand.hbm [shape: f32[20,128], index: 0, kind: input, shape index: {}]
  %s1 = inlined_call_operand.hbm [shape: f32[1,1], index: 1, kind: output, shape index: {}]
  %s2 = sld [smem:[#allocation0]]
  $region26: #{tpu_custom_call.1} parent=0
    _
  %s4 = ssub.s32 1, %s2
  %s5 = scalar_select 0, %s4, %s2
  $region1: #{tpu_custom_call.1} parent=0
    #allocation3 [shape = 'u8[12288]{0}', space=vmem, size = 0x3000, scoped, tag = 'input window, operand 0, single buffered']
    #allocation4 [shape = 's32[1]{0}', space=sflag, size = 0x4, scoped, tag = 'scoped memory for tpu_custom_call.1']
    #allocation5 [shape = 's32[1]{0}', space=sflag, size = 0x4, scoped, tag = 'scoped memory for tpu_custom_call.1']
    #allocation6 [shape = 'u8[512]{0}', space=smem, size = 0x200, scoped, tag = 'output window, operand 0, single buffered']
    %6 = vsyncpa [#allocation4], 0
    %7 = vsyncpa [#allocation5], 0
    // Predicated region
    $region2: #{tpu_custom_call.1} parent=1 // pred_check
      _
    $region3: #{tpu_custom_call.1} parent=1 // pred_check_branch
      %9 = sbr.rel (0) target = $region5
    $region4: #{tpu_custom_call.1} parent=1 // pred_region
      %s11 = ssub.s32 384, 384
      %12 = vsyncadd [#allocation4], %s11
      %s13 = sshll.u32 [#allocation3], 4
      %s14 = int_to_ptr.vmem [resolvable:$true] %s13
      %19 = dma.hbm_to_vmem [thread:$0]  %s0, 384, %s14, [#allocation4], 128, 128, 8
    $region5: #{tpu_custom_call.1} parent=1 // pred_fallthru
      _
    // Predicated region
    $region6: #{tpu_custom_call.1} parent=1 // pred_check
      _
    $region7: #{tpu_custom_call.1} parent=1 // pred_check_branch
      %21 = sbr.rel (0) target = $region9
    $region8: #{tpu_custom_call.1} parent=1 // pred_region
      %22 = dma.done [#allocation4], 384
    $region9: #{tpu_custom_call.1} parent=1 // pred_fallthru
      _
    %p23 = scmp.eq.s32.totalorder 0, 0
    // Predicated region
    $region10: #{tpu_custom_call.1} parent=1 // pred_check
      %p24 = pneg %p23
    $region11: #{tpu_custom_call.1} parent=1 // pred_check_branch
      %26 = sbr.rel (%p24) target = $region13
    $region12: #{tpu_custom_call.1} parent=1 // pred_region
      %27 = vst [vmem:[#allocation2] sm:$0x1] 0.0
    $region13: #{tpu_custom_call.1} parent=1 // pred_fallthru
      _
    %v28 = vld [vmem:[#allocation3] sm:$0xff]
    %v29 = vld [vmem:[#allocation3 + $0x8] sm:$0xff]
    %v30 = vld [vmem:[#allocation3 + $0x10] sm:$0xff]
    %v31 = vlaneseq
    %v32 = vshrl.u32 %v31, 7
    %v33 = vadd.s32 %v32, 8
    %v34 = vadd.s32 %v32, 16
    %s35 = smul.u32 0, 24
    %v36 = vstv %s35
    %v37 = vadd.s32 %v32, %v36
    %v38 = vadd.s32 %v33, %v36
    %v39 = vadd.s32 %v34, %v36
    %vm40 = vcmp.lt.s32.totalorder %v37, 20
    %vm41 = vcmp.lt.s32.totalorder %v38, 20
    %vm42 = vcmp.lt.s32.totalorder %v39, 20
    %43 = vmax.xlane.f32.xlu0 %v28
    %v44 = vpop.xlane.xlu0 %43
    %45 = vmax.xlane.f32.xlu0 %v29
    %v46 = vpop.xlane.xlu0 %45
    %47 = vmax.xlane.f32.xlu0 %v30
    %v48 = vpop.xlane.xlu0 %47
    %v49 = vsub.f32 %v28, %v44
    %v50 = vsub.f32 %v29, %v46
    %v51 = vsub.f32 %v30, %v48
    %v52 = vmul.f32 %v49, 1.442695
    %v53 = vpow.pop %v52
    %v54 = vmul.f32 %v50, 1.442695
    %v55 = vpow.pop %v54
    %v56 = vmul.f32 %v51, 1.442695
    %v57 = vpow.pop %v56
    %58 = vadd.xlane.f32.xlu0 %v53
    %v59 = vpop.xlane.xlu0 %58
    %60 = vadd.xlane.f32.xlu0 %v55
    %v61 = vpop.xlane.xlu0 %60
    %62 = vadd.xlane.f32.xlu0 %v57
    %v63 = vpop.xlane.xlu0 %62
    %v64 = vrcp.pop %v59
    %v65 = vrcp.pop %v61
    %v66 = vrcp.pop %v63
    %v67 = vmul.f32 %v59, %v64
    %v68 = vmul.f32 %v61, %v65
    %v69 = vmul.f32 %v63, %v66
    %v70 = vsub.f32 2.0, %v67
    %v71 = vsub.f32 2.0, %v68
    %v72 = vsub.f32 2.0, %v69
    %v73 = vmul.f32 %v64, %v70
    %v74 = vmul.f32 %v65, %v71
    %v75 = vmul.f32 %v66, %v72
    %v76 = vmul.f32 %v53, %v73
    %v77 = vmul.f32 %v55, %v74
    %v78 = vmul.f32 %v57, %v75
    %v79 = vsel %vm40, 1, 0
    %v80 = vsel %vm41, 1, 0
    %v81 = vsel %vm42, 1, 0
    %vm82 = vcmp.eq.s32.totalorder %v79, 1
    %vm83 = vcmp.eq.s32.totalorder %v80, 1
    %vm84 = vcmp.eq.s32.totalorder %v81, 1
    %v85 = vsel %vm82, %v76, 0.0
    %v86 = vsel %vm83, %v77, 0.0
    %v87 = vsel %vm84, %v78, 0.0
    %v88 = vld [vmem:[#allocation2] sm:$0x1]
    %v89 = vadd.f32 %v85, %v86
    %v90 = vadd.f32 %v89, %v87
    %v91 = vrot.slane %v90, 4
    %v92 = vadd.f32 %v90, %v91
    %v93 = vrot.slane %v92, 2
    %v94 = vadd.f32 %v92, %v93
    %v95 = vrot.slane %v94, 1
    %v96 = vadd.f32 %v94, %v95
    %v97 = vadd.f32 %v88, %v96
    %98 = vst [vmem:[#allocation2] sm:$0x1] %v97
    // Predicated region
    $region14: #{tpu_custom_call.1} parent=1 // pred_check
      %p99 = pneg %p23
    $region15: #{tpu_custom_call.1} parent=1 // pred_check_branch
      %101 = sbr.rel (%p99) target = $region17
    $region16: #{tpu_custom_call.1} parent=1 // pred_region
      %v102 = vld [vmem:[#allocation2] sm:$0x1]
      %v103 = vmul.f32 %v102, 0.05
      %v104 = vlaneseq
      %v105 = vand.u32 %v104, 127
      %vm106 = vcmp.lt.s32.totalorder %v105, 32
      %v107 = vlog2.pop %v103
      %v108 = vmul.f32 %v107, 0.6931472
      %v109 = vmul.f32 %v103, %v108
      %v110 = vsel %vm106, %v109, 0.0
      %vm111 = vcmask 1040384
      %v112 = vsel %vm111, %v110, 0.0
      %113 = vadd.xlane.f32.xlu0 %v112
      %v114 = vpop.xlane.xlu0 %113
      %v115 = vrot.slane %v114, 4
      %v116 = vadd.f32 %v114, %v115
      %v117 = vrot.slane %v116, 2
      %v118 = vadd.f32 %v116, %v117
      %v119 = vrot.slane %v118, 1
      %v120 = vadd.f32 %v118, %v119
      %s121 = vtos %v120
      %s122 = smul.f32 %s121, 0.03125
      %s123 = scalar_lea.smem [#allocation6], 0
      %124 = sst [smem:[%s123]] %s122
    $region17: #{tpu_custom_call.1} parent=1 // pred_fallthru
      _
    // Predicated region
    $region18: #{tpu_custom_call.1} parent=1 // pred_check
      _
    $region19: #{tpu_custom_call.1} parent=1 // pred_check_branch
      %126 = sbr.rel (0) target = $region21
    $region20: #{tpu_custom_call.1} parent=1 // pred_region
      %s128 = ssub.s32 16, 16
      %129 = vsyncadd [#allocation5], %s128
      %132 = dma.smem_to_hbm [#allocation6], 16, %s1, [#allocation5]
    $region21: #{tpu_custom_call.1} parent=1 // pred_fallthru
      _
    // Predicated region
    $region22: #{tpu_custom_call.1} parent=1 // pred_check
      _
    $region23: #{tpu_custom_call.1} parent=1 // pred_check_branch
      %134 = sbr.rel (0) target = $region25
    $region24: #{tpu_custom_call.1} parent=1 // pred_region
      %135 = dma.done [#allocation5], 16
    $region25: #{tpu_custom_call.1} parent=1 // pred_fallthru
      _
    %136 = sfence
    %137 = vsyncpa [#allocation4], 1
    %138 = vsyncpa [#allocation5], 1

</llo_original>
